<compile_context>
chip_gen: v7x
topology: tpu7x:2x2x1
jax: 0.10.0
libtpu: 0.0.40
codegen_flags: <defaults>
</compile_context>

<pallas_src>
import numpy as np
import jax
import jax.numpy as jnp
from jax import lax
from jax.experimental import pallas as pl
from jax.experimental.pallas import tpu as pltpu

# ---------------- model hyper-parameters (small, self-consistent) ----------------
B = 2                 # batch
H = 4                 # len(args.electrodes)
T = 64                # time samples
C_FEATS = 8           # args.c_feats
C1 = C_FEATS // 2     # conv1 output channels
C2 = C_FEATS          # conv2/conv3 channels
POOL = 2              # args.pool_wight
OUT_FEATS = 4         # args.out_feats
K1, PAD1 = 51, 25     # conv1 temporal kernel / padding
K3, PAD3 = 15, 7      # conv3 temporal kernel / padding
T1 = T // POOL                  # after conv2 avg-pool
T2 = T1 // (2 * POOL)           # after conv3 avg-pool  ("remain")
GROUP_R = C2 // C1              # outputs per group in the grouped conv2
BN_EPS = 1e-5

# -------- static (numpy) index / pooling helpers used to build the fused weights ----
_IDX1 = np.arange(T)[:, None] - np.arange(T)[None, :] + PAD1          # (T, T): t_in - t_out + pad
_VALID1 = (_IDX1 >= 0) & (_IDX1 < K1)
_IDX1_C = np.clip(_IDX1, 0, K1 - 1)

_IDX3 = np.arange(T1)[:, None] - np.arange(T1)[None, :] + PAD3        # (T1, T1)
_VALID3 = (_IDX3 >= 0) & (_IDX3 < K3)
_IDX3_C = np.clip(_IDX3, 0, K3 - 1)

_POOL1 = (np.arange(T)[:, None] // POOL ==
          np.arange(T1)[None, :]).astype(np.float32) / POOL           # (T, T1)
_POOL2 = (np.arange(T1)[:, None] // (2 * POOL) ==
          np.arange(T2)[None, :]).astype(np.float32) / (2 * POOL)     # (T1, T2)

_GROUPS = np.arange(C2) // GROUP_R                                    # group of each conv2 output


def _elu(x):
    # ELU(alpha=1): x if x > 0 else exp(x) - 1   (clamp arg of exp for the unused branch)
    return jnp.where(x > 0, x, jnp.exp(jnp.minimum(x, 0.0)) - 1.0)


# ---------------------------------- kernel ----------------------------------------
def eegnet_kernel(x_ref,                     # VMEM (B, H*T)
                  m12_ref, b12_ref,          # VMEM (H*T, C2*T), (1, C2*T)
                  m3_ref, b3_ref,            # VMEM (C2*T, C2*T1), (1, C2*T1)
                  mc_ref, bc_ref,            # VMEM (C2*T1, OUT_FEATS), (1, OUT_FEATS)
                  out_ref):                  # VMEM (B, OUT_FEATS)
    # stage A: conv1 + BN1 + grouped conv2 + BN2 + ELU   (one matmul, batch in sublanes)
    a = _elu(jnp.dot(x_ref[...], m12_ref[...],
                     preferred_element_type=jnp.float32) + b12_ref[...])     # (B, C2*T)
    # stage B: avg-pool(P) + conv3 + BN3 + ELU           (pool folded into the matmul)
    b = _elu(jnp.dot(a, m3_ref[...],
                     preferred_element_type=jnp.float32) + b3_ref[...])      # (B, C2*T1)
    # stage C: avg-pool(2P) + channel-major flatten + Linear (single matmul, single store)
    out_ref[...] = jnp.dot(b, mc_ref[...],
                           preferred_element_type=jnp.float32) + bc_ref[...]
    # TODO(synk): nn.Dropout is identity in eval mode; intentionally omitted.


# ----------------------- wrapper: fold weights / build fused matrices ----------------
def fold_params(p):
    """Eval-mode folding: BN -> scale/bias, convs -> Toeplitz/block matmuls, pools fused."""
    s1 = p['g1'] / jnp.sqrt(p['v1'] + BN_EPS)
    b1 = p['be1'] - p['m1'] * s1
    s2 = p['g2'] / jnp.sqrt(p['v2'] + BN_EPS)
    b2 = p['be2'] - p['m2'] * s2
    s3 = p['g3'] / jnp.sqrt(p['v3'] + BN_EPS)
    b3 = p['be3'] - p['m3'] * s3

    # ---- stage A matrix: conv1 Toeplitz band (exact zero padding) x grouped conv2 ----
    w1t = jnp.where(_VALID1[None], p['w1_raw'][:, _IDX1_C], 0.0)       # (C1, T, T)
    w1t_co = w1t[_GROUPS]                                              # (C2, T, T)
    coef = (s2 * s1[_GROUPS])[:, None] * p['w2_raw']                   # (C2, H)
    m12 = jnp.einsum('ch,ctu->htcu', coef, w1t_co).reshape(H * T, C2 * T)
    bias12 = s2 * b1[_GROUPS] * p['w2_raw'].sum(axis=1) + b2           # (C2,)
    b12 = jnp.repeat(bias12, T)[None, :]                               # (1, C2*T)

    # ---- stage B matrix: avg-pool(P) folded into conv3 Toeplitz (+ BN3 scale) ----
    w3t = jnp.where(_VALID3[None, None], p['w3_raw'][:, :, _IDX3_C], 0.0)   # (C2, C2, T1, T1)
    w3t = w3t * s3[:, None, None, None]
    m3 = jnp.einsum('ti,cdio->dtco', jnp.asarray(_POOL1), w3t).reshape(C2 * T, C2 * T1)
    b3r = jnp.repeat(b3, T1)[None, :]                                  # (1, C2*T1)

    # ---- stage C matrix: avg-pool(2P) folded into the (channel-major) classifier ----
    wc3 = p['Wc'].reshape(OUT_FEATS, C2, T2)
    mc = jnp.einsum('ocu,tu->cto', wc3, jnp.asarray(_POOL2)).reshape(C2 * T1, OUT_FEATS)
    bc = p['bc'][None, :]                                              # (1, OUT_FEATS)

    return m12, b12, m3, b3r, mc, bc


@jax.jit
def eegnet_forward(x, folded):
    m12, b12, m3, b3r, mc, bc = folded
    x_flat = x.reshape(B, H * T)           # columns ordered (h, t) -- matches m12 rows

    vmem = pl.BlockSpec(memory_space=pltpu.MemorySpace.VMEM)
    return pl.pallas_call(
        eegnet_kernel,
        out_shape=jax.ShapeDtypeStruct((B, OUT_FEATS), jnp.float32),
        in_specs=[vmem] * 7,
        out_specs=vmem,
    )(x_flat, m12, b12, m3, b3r, mc, bc)


# --------------------------- pure-JAX reference (eval mode) ------------------------
def reference_forward(x, p):
    dn = ('NCHW', 'OIHW', 'NCHW')

    def bn(y, g, be, m, v):
        br = lambda a: a[None, :, None, None]
        return (y - br(m)) / jnp.sqrt(br(v) + BN_EPS) * br(g) + br(be)

    y = lax.conv_general_dilated(x[:, None, :, :], p['w1_raw'][:, None, None, :],
                                 (1, 1), ((0, 0), (PAD1, PAD1)), dimension_numbers=dn)
    y = bn(y, p['g1'], p['be1'], p['m1'], p['v1'])

    y = lax.conv_general_dilated(y, p['w2_raw'][:, None, :, None], (1, 1), 'VALID',
                                 dimension_numbers=dn, feature_group_count=C1)
    y = bn(y, p['g2'], p['be2'], p['m2'], p['v2'])
    y = jax.nn.elu(y)
    y = y.reshape(B, C2, 1, T // POOL, POOL).mean(-1)

    y = lax.conv_general_dilated(y, p['w3_raw'][:, :, None, :], (1, 1),
                                 ((0, 0), (PAD3, PAD3)), dimension_numbers=dn)
    y = bn(y, p['g3'], p['be3'], p['m3'], p['v3'])
    y = jax.nn.elu(y)
    y = y.reshape(B, C2, 1, T1 // (2 * POOL), 2 * POOL).mean(-1)

    y = y.reshape(B, -1)
    return y @ p['Wc'].T + p['bc']


# ------------------------------------ main ------------------------------------------
if __name__ == "__main__":
    key = jax.random.PRNGKey(0)
    ks = jax.random.split(key, 20)
    f32 = jnp.float32

    params = dict(
        # conv1 + BN1
        w1_raw=0.1 * jax.random.normal(ks[0], (C1, K1), f32),
        g1=1.0 + 0.1 * jax.random.normal(ks[1], (C1,), f32),
        be1=0.1 * jax.random.normal(ks[2], (C1,), f32),
        m1=0.1 * jax.random.normal(ks[3], (C1,), f32),
        v1=0.5 + jax.random.uniform(ks[4], (C1,), f32),
        # conv2 + BN2
        w2_raw=0.1 * jax.random.normal(ks[5], (C2, H), f32),
        g2=1.0 + 0.1 * jax.random.normal(ks[6], (C2,), f32),
        be2=0.1 * jax.random.normal(ks[7], (C2,), f32),
        m2=0.1 * jax.random.normal(ks[8], (C2,), f32),
        v2=0.5 + jax.random.uniform(ks[9], (C2,), f32),
        # conv3 + BN3
        w3_raw=0.1 * jax.random.normal(ks[10], (C2, C2, K3), f32),
        g3=1.0 + 0.1 * jax.random.normal(ks[11], (C2,), f32),
        be3=0.1 * jax.random.normal(ks[12], (C2,), f32),
        m3=0.1 * jax.random.normal(ks[13], (C2,), f32),
        v3=0.5 + jax.random.uniform(ks[14], (C2,), f32),
        # classifier
        Wc=0.1 * jax.random.normal(ks[15], (OUT_FEATS, C2 * T2), f32),
        bc=0.1 * jax.random.normal(ks[16], (OUT_FEATS,), f32),
    )

    x = jax.random.normal(ks[17], (B, H, T), f32)

    folded = fold_params(params)               # one-time eval-mode weight folding
    out = eegnet_forward(x, folded)
    out = jax.block_until_ready(out)

    ref = reference_forward(x, params)
    assert out.shape == (B, OUT_FEATS)
    np.testing.assert_allclose(np.asarray(out), np.asarray(ref), rtol=2e-4, atol=2e-4)

    print("KERNEL_OK")
</pallas_src>

<mosaic_0001>
module attributes {stable_mosaic.version = 11 : i64} {
  func.func @eegnet_kernel(%arg0: memref<2x256xf32, #tpu.memory_space<vmem>>, %arg1: memref<256x512xf32, #tpu.memory_space<vmem>>, %arg2: memref<1x512xf32, #tpu.memory_space<vmem>>, %arg3: memref<512x256xf32, #tpu.memory_space<vmem>>, %arg4: memref<1x256xf32, #tpu.memory_space<vmem>>, %arg5: memref<256x4xf32, #tpu.memory_space<vmem>>, %arg6: memref<1x4xf32, #tpu.memory_space<vmem>>, %arg7: memref<2x4xf32, #tpu.memory_space<vmem>>) attributes {dimension_semantics = [], scalar_prefetch = 0 : i64, scratch_operands = 0 : i64, tpu.core_type = #tpu.core_type<tc>} {
    %c0 = arith.constant 0 : index
    %c0_0 = arith.constant 0 : index
    %0 = vector.load %arg0[%c0, %c0_0] : memref<2x256xf32, #tpu.memory_space<vmem>>, vector<2x256xf32>
    %c0_1 = arith.constant 0 : index
    %c0_2 = arith.constant 0 : index
    %1 = vector.load %arg1[%c0_1, %c0_2] : memref<256x512xf32, #tpu.memory_space<vmem>>, vector<256x512xf32>
    %cst = arith.constant dense<0.000000e+00> : vector<2x512xf32>
    %2 = tpu.matmul %0, %1, %cst {dimension_numbers = #tpu.dot_dimension_numbers<[1], [0], [0], [1], [0, 0, 1, 1], [], []>} : vector<2x256xf32>, vector<256x512xf32>, vector<2x512xf32> -> vector<2x512xf32>
    %c0_3 = arith.constant 0 : index
    %c0_4 = arith.constant 0 : index
    %3 = vector.load %arg2[%c0_3, %c0_4] : memref<1x512xf32, #tpu.memory_space<vmem>>, vector<1x512xf32>
    %4 = vector.broadcast %3 : vector<1x512xf32> to vector<2x512xf32>
    %5 = arith.addf %2, %4 : vector<2x512xf32>
    %cst_5 = arith.constant 0.000000e+00 : f32
    %6 = vector.broadcast %cst_5 : f32 to vector<2x512xf32>
    %7 = arith.cmpf ogt, %5, %6 : vector<2x512xf32>
    %cst_6 = arith.constant 0.000000e+00 : f32
    %8 = vector.broadcast %cst_6 : f32 to vector<2x512xf32>
    %9 = arith.minimumf %5, %8 : vector<2x512xf32>
    %10 = math.exp %9 : vector<2x512xf32>
    %cst_7 = arith.constant 1.000000e+00 : f32
    %11 = vector.broadcast %cst_7 : f32 to vector<2x512xf32>
    %12 = arith.subf %10, %11 : vector<2x512xf32>
    %13 = arith.select %7, %5, %12 : vector<2x512xi1>, vector<2x512xf32>
    %c0_8 = arith.constant 0 : index
    %c0_9 = arith.constant 0 : index
    %14 = vector.load %arg3[%c0_8, %c0_9] : memref<512x256xf32, #tpu.memory_space<vmem>>, vector<512x256xf32>
    %cst_10 = arith.constant dense<0.000000e+00> : vector<2x256xf32>
    %15 = tpu.matmul %13, %14, %cst_10 {dimension_numbers = #tpu.dot_dimension_numbers<[1], [0], [0], [1], [0, 0, 1, 1], [], []>} : vector<2x512xf32>, vector<512x256xf32>, vector<2x256xf32> -> vector<2x256xf32>
    %c0_11 = arith.constant 0 : index
    %c0_12 = arith.constant 0 : index
    %16 = vector.load %arg4[%c0_11, %c0_12] : memref<1x256xf32, #tpu.memory_space<vmem>>, vector<1x256xf32>
    %17 = vector.broadcast %16 : vector<1x256xf32> to vector<2x256xf32>
    %18 = arith.addf %15, %17 : vector<2x256xf32>
    %cst_13 = arith.constant 0.000000e+00 : f32
    %19 = vector.broadcast %cst_13 : f32 to vector<2x256xf32>
    %20 = arith.cmpf ogt, %18, %19 : vector<2x256xf32>
    %cst_14 = arith.constant 0.000000e+00 : f32
    %21 = vector.broadcast %cst_14 : f32 to vector<2x256xf32>
    %22 = arith.minimumf %18, %21 : vector<2x256xf32>
    %23 = math.exp %22 : vector<2x256xf32>
    %cst_15 = arith.constant 1.000000e+00 : f32
    %24 = vector.broadcast %cst_15 : f32 to vector<2x256xf32>
    %25 = arith.subf %23, %24 : vector<2x256xf32>
    %26 = arith.select %20, %18, %25 : vector<2x256xi1>, vector<2x256xf32>
    %c0_16 = arith.constant 0 : index
    %c0_17 = arith.constant 0 : index
    %27 = vector.load %arg5[%c0_16, %c0_17] : memref<256x4xf32, #tpu.memory_space<vmem>>, vector<256x4xf32>
    %cst_18 = arith.constant dense<0.000000e+00> : vector<2x4xf32>
    %28 = tpu.matmul %26, %27, %cst_18 {dimension_numbers = #tpu.dot_dimension_numbers<[1], [0], [0], [1], [0, 0, 1, 1], [], []>} : vector<2x256xf32>, vector<256x4xf32>, vector<2x4xf32> -> vector<2x4xf32>
    %c0_19 = arith.constant 0 : index
    %c0_20 = arith.constant 0 : index
    %29 = vector.load %arg6[%c0_19, %c0_20] : memref<1x4xf32, #tpu.memory_space<vmem>>, vector<1x4xf32>
    %30 = vector.broadcast %29 : vector<1x4xf32> to vector<2x4xf32>
    %31 = arith.addf %28, %30 : vector<2x4xf32>
    %c0_21 = arith.constant 0 : index
    %c0_22 = arith.constant 0 : index
    %32 = vector.load %arg7[%c0_21, %c0_22] : memref<2x4xf32, #tpu.memory_space<vmem>>, vector<2x4xf32>
    tpu.vector_store %arg7[%c0_21, %c0_22], %31 {strides = array<i32>} : memref<2x4xf32, #tpu.memory_space<vmem>>, vector<2x4xf32>,
    return
  }
}

</mosaic_0001>

<llo_original>
// kernel: eegnet_forward.1
$region0: #{eegnet_forward.1}
  #allocation0 [shape = 'u32[]', space=smem, size = 0x4, offset = 0x4, fixed_abs, tag = 'smem constant byte address 0x4 - core index']
  #allocation1 [shape = 'u32[144,128]{1,0:T(1,128)}', space=vmem, size = 0x12000, scoped, tag = 'internal scratch']
  %s0 = inlined_call_operand.vmem [shape: f32[2,256], index: 0, kind: input, shape index: {}]
  %s1 = inlined_call_operand.hbm [shape: f32[256,512], index: 1, kind: input, shape index: {}]
  %s2 = inlined_call_operand.vmem [shape: f32[1,512], index: 2, kind: input, shape index: {}]
  %s3 = inlined_call_operand.hbm [shape: f32[512,256], index: 3, kind: input, shape index: {}]
  %s4 = inlined_call_operand.vmem [shape: f32[1,256], index: 4, kind: input, shape index: {}]
  %s5 = inlined_call_operand.vmem [shape: f32[256,4], index: 5, kind: input, shape index: {}]
  %s6 = inlined_call_operand.vmem [shape: f32[1,4], index: 6, kind: input, shape index: {}]
  %s7 = inlined_call_operand.hbm [shape: f32[2,4], index: 7, kind: output, shape index: {}]
  %s8 = sld [smem:[#allocation0]]
  $region46: #{eegnet_forward.1} parent=0
    _
  %s10 = ssub.s32 1, %s8
  %s11 = scalar_select 0, %s10, %s8
  $region1: #{eegnet_forward.1} parent=0
    #allocation2 [shape = 'u8[524288]{0}', space=vmem, size = 0x80000, scoped, tag = 'input window, operand 1, single buffered']
    #allocation3 [shape = 's32[1]{0}', space=sflag, size = 0x4, scoped, tag = 'scoped memory for eegnet_forward.1']
    #allocation4 [shape = 's32[1]{0}', space=sflag, size = 0x4, scoped, tag = 'scoped memory for eegnet_forward.1']
    #allocation5 [shape = 'u8[524288]{0}', space=vmem, size = 0x80000, scoped, tag = 'input window, operand 3, single buffered']
    #allocation6 [shape = 's32[1]{0}', space=sflag, size = 0x4, scoped, tag = 'scoped memory for eegnet_forward.1']
    #allocation7 [shape = 'u8[1024]{0}', space=vmem, size = 0x400, scoped, tag = 'output window, operand 0, single buffered']
    %12 = vsyncpa [#allocation3], 0
    %13 = vsyncpa [#allocation6], 0
    %14 = vsyncpa [#allocation4], 0
    // Predicated region
    $region2: #{eegnet_forward.1} parent=1 // pred_check
      _
    $region3: #{eegnet_forward.1} parent=1 // pred_check_branch
      %16 = sbr.rel (0) target = $region5
    $region4: #{eegnet_forward.1} parent=1 // pred_region
      _
    $region5: #{eegnet_forward.1} parent=1 // pred_fallthru
      _
    // Predicated region
    $region6: #{eegnet_forward.1} parent=1 // pred_check
      _
    $region7: #{eegnet_forward.1} parent=1 // pred_check_branch
      %18 = sbr.rel (0) target = $region9
    $region8: #{eegnet_forward.1} parent=1 // pred_region
      %s20 = ssub.s32 16384, 16384
      %21 = vsyncadd [#allocation3], %s20
      %s22 = sshll.u32 [#allocation2], 4
      %s23 = int_to_ptr.vmem [resolvable:$true] %s22
      %28 = dma.hbm_to_vmem [thread:$0]  %s1, 16384, %s23, [#allocation3], 512, 512, 32
    $region9: #{eegnet_forward.1} parent=1 // pred_fallthru
      _
    // Predicated region
    $region10: #{eegnet_forward.1} parent=1 // pred_check
      _
    $region11: #{eegnet_forward.1} parent=1 // pred_check_branch
      %30 = sbr.rel (0) target = $region13
    $region12: #{eegnet_forward.1} parent=1 // pred_region
      _
    $region13: #{eegnet_forward.1} parent=1 // pred_fallthru
      _
    // Predicated region
    $region14: #{eegnet_forward.1} parent=1 // pred_check
      _
    $region15: #{eegnet_forward.1} parent=1 // pred_check_branch
      %32 = sbr.rel (0) target = $region17
    $region16: #{eegnet_forward.1} parent=1 // pred_region
      %s34 = ssub.s32 16384, 16384
      %35 = vsyncadd [#allocation6], %s34
      %s36 = sshll.u32 [#allocation5], 4
      %s37 = int_to_ptr.vmem [resolvable:$true] %s36
      %42 = dma.hbm_to_vmem [thread:$0]  %s3, 16384, %s37, [#allocation6], 256, 256, 16
    $region17: #{eegnet_forward.1} parent=1 // pred_fallthru
      _
    // Predicated region
    $region18: #{eegnet_forward.1} parent=1 // pred_check
      _
    $region19: #{eegnet_forward.1} parent=1 // pred_check_branch
      %44 = sbr.rel (0) target = $region21
    $region20: #{eegnet_forward.1} parent=1 // pred_region
      _
    $region21: #{eegnet_forward.1} parent=1 // pred_fallthru
      _
    // Predicated region
    $region22: #{eegnet_forward.1} parent=1 // pred_check
      _
    $region23: #{eegnet_forward.1} parent=1 // pred_check_branch
      %46 = sbr.rel (0) target = $region25
    $region24: #{eegnet_forward.1} parent=1 // pred_region
      _
    $region25: #{eegnet_forward.1} parent=1 // pred_fallthru
      _
    // Predicated region
    $region26: #{eegnet_forward.1} parent=1 // pred_check
      _
    $region27: #{eegnet_forward.1} parent=1 // pred_check_branch
      %48 = sbr.rel (0) target = $region29
    $region28: #{eegnet_forward.1} parent=1 // pred_region
      _
    $region29: #{eegnet_forward.1} parent=1 // pred_fallthru
      _
    // Predicated region
    $region30: #{eegnet_forward.1} parent=1 // pred_check
      _
    $region31: #{eegnet_forward.1} parent=1 // pred_check_branch
      %50 = sbr.rel (0) target = $region33
    $region32: #{eegnet_forward.1} parent=1 // pred_region
      %51 = dma.done [#allocation3], 16384
    $region33: #{eegnet_forward.1} parent=1 // pred_fallthru
      _
    // Predicated region
    $region34: #{eegnet_forward.1} parent=1 // pred_check
      _
    $region35: #{eegnet_forward.1} parent=1 // pred_check_branch
      %53 = sbr.rel (0) target = $region37
    $region36: #{eegnet_forward.1} parent=1 // pred_region
      %54 = dma.done [#allocation6], 16384
    $region37: #{eegnet_forward.1} parent=1 // pred_fallthru
      _
    %v55 = vld [vmem:[%s0] sm:$0xf]
    %v56 = vld [vmem:[#allocation2] sm:$0xff]
    %v57 = vld [vmem:[#allocation2 + $0x8] sm:$0xff]
    %v58 = vld [vmem:[#allocation2 + $0x10] sm:$0xff]
    %v59 = vld [vmem:[#allocation2 + $0x18] sm:$0xff]
    %v60 = vld [vmem:[#allocation2 + $0x20] sm:$0xff]
    %v61 = vld [vmem:[#allocation2 + $0x28] sm:$0xff]
    %v62 = vld [vmem:[#allocation2 + $0x30] sm:$0xff]
    %v63 = vld [vmem:[#allocation2 + $0x38] sm:$0xff]
    %v64 = vld [vmem:[#allocation2 + $0x40] sm:$0xff]
    %v65 = vld [vmem:[#allocation2 + $0x48] sm:$0xff]
    %v66 = vld [vmem:[#allocation2 + $0x50] sm:$0xff]
    %v67 = vld [vmem:[#allocation2 + $0x58] sm:$0xff]
    %v68 = vld [vmem:[#allocation2 + $0x60] sm:$0xff]
    %v69 = vld [vmem:[#allocation2 + $0x68] sm:$0xff]
    %v70 = vld [vmem:[#allocation2 + $0x70] sm:$0xff]
    %v71 = vld [vmem:[#allocation2 + $0x78] sm:$0xff]
    %v72 = vld [vmem:[#allocation2 + $0x80] sm:$0xff]
    %v73 = vld [vmem:[#allocation2 + $0x88] sm:$0xff]
    %v74 = vld [vmem:[#allocation2 + $0x90] sm:$0xff]
    %v75 = vld [vmem:[#allocation2 + $0x98] sm:$0xff]
    %v76 = vld [vmem:[#allocation2 + $0xa0] sm:$0xff]
    %v77 = vld [vmem:[#allocation2 + $0xa8] sm:$0xff]
    %v78 = vld [vmem:[#allocation2 + $0xb0] sm:$0xff]
    %v79 = vld [vmem:[#allocation2 + $0xb8] sm:$0xff]
    %v80 = vld [vmem:[#allocation2 + $0xc0] sm:$0xff]
    %v81 = vld [vmem:[#allocation2 + $0xc8] sm:$0xff]
    %v82 = vld [vmem:[#allocation2 + $0xd0] sm:$0xff]
    %v83 = vld [vmem:[#allocation2 + $0xd8] sm:$0xff]
    %v84 = vld [vmem:[#allocation2 + $0xe0] sm:$0xff]
    %v85 = vld [vmem:[#allocation2 + $0xe8] sm:$0xff]
    %v86 = vld [vmem:[#allocation2 + $0xf0] sm:$0xff]
    %v87 = vld [vmem:[#allocation2 + $0xf8] sm:$0xff]
    %v88 = vld [vmem:[#allocation2 + $0x100] sm:$0xff]
    %v89 = vld [vmem:[#allocation2 + $0x108] sm:$0xff]
    %v90 = vld [vmem:[#allocation2 + $0x110] sm:$0xff]
    %v91 = vld [vmem:[#allocation2 + $0x118] sm:$0xff]
    %v92 = vld [vmem:[#allocation2 + $0x120] sm:$0xff]
    %v93 = vld [vmem:[#allocation2 + $0x128] sm:$0xff]
    %v94 = vld [vmem:[#allocation2 + $0x130] sm:$0xff]
    %v95 = vld [vmem:[#allocation2 + $0x138] sm:$0xff]
    %v96 = vld [vmem:[#allocation2 + $0x140] sm:$0xff]
    %v97 = vld [vmem:[#allocation2 + $0x148] sm:$0xff]
    %v98 = vld [vmem:[#allocation2 + $0x150] sm:$0xff]
    %v99 = vld [vmem:[#allocation2 + $0x158] sm:$0xff]
    %v100 = vld [vmem:[#allocation2 + $0x160] sm:$0xff]
    %v101 = vld [vmem:[#allocation2 + $0x168] sm:$0xff]
    %v102 = vld [vmem:[#allocation2 + $0x170] sm:$0xff]
    %v103 = vld [vmem:[#allocation2 + $0x178] sm:$0xff]
    %v104 = vld [vmem:[#allocation2 + $0x180] sm:$0xff]
    %v105 = vld [vmem:[#allocation2 + $0x188] sm:$0xff]
    %v106 = vld [vmem:[#allocation2 + $0x190] sm:$0xff]
    %v107 = vld [vmem:[#allocation2 + $0x198] sm:$0xff]
    %v108 = vld [vmem:[#allocation2 + $0x1a0] sm:$0xff]
    %v109 = vld [vmem:[#allocation2 + $0x1a8] sm:$0xff]
    %v110 = vld [vmem:[#allocation2 + $0x1b0] sm:$0xff]
    %v111 = vld [vmem:[#allocation2 + $0x1b8] sm:$0xff]
    %v112 = vld [vmem:[#allocation2 + $0x1c0] sm:$0xff]
    %v113 = vld [vmem:[#allocation2 + $0x1c8] sm:$0xff]
    %v114 = vld [vmem:[#allocation2 + $0x1d0] sm:$0xff]
    %v115 = vld [vmem:[#allocation2 + $0x1d8] sm:$0xff]
    %v116 = vld [vmem:[#allocation2 + $0x1e0] sm:$0xff]
    %v117 = vld [vmem:[#allocation2 + $0x1e8] sm:$0xff]
    %v118 = vld [vmem:[#allocation2 + $0x1f0] sm:$0xff]
    %v119 = vld [vmem:[#allocation2 + $0x1f8] sm:$0xff]
    %v120 = vld [vmem:[#allocation2 + $0x200] sm:$0xff]
    %v121 = vld [vmem:[#allocation2 + $0x208] sm:$0xff]
    %v122 = vld [vmem:[#allocation2 + $0x210] sm:$0xff]
    %v123 = vld [vmem:[#allocation2 + $0x218] sm:$0xff]
    %v124 = vld [vmem:[#allocation2 + $0x220] sm:$0xff]
    %v125 = vld [vmem:[#allocation2 + $0x228] sm:$0xff]
    %v126 = vld [vmem:[#allocation2 + $0x230] sm:$0xff]
    %v127 = vld [vmem:[#allocation2 + $0x238] sm:$0xff]
    %v128 = vld [vmem:[#allocation2 + $0x240] sm:$0xff]
    %v129 = vld [vmem:[#allocation2 + $0x248] sm:$0xff]
    %v130 = vld [vmem:[#allocation2 + $0x250] sm:$0xff]
    %v131 = vld [vmem:[#allocation2 + $0x258] sm:$0xff]
    %v132 = vld [vmem:[#allocation2 + $0x260] sm:$0xff]
    %v133 = vld [vmem:[#allocation2 + $0x268] sm:$0xff]
    %v134 = vld [vmem:[#allocation2 + $0x270] sm:$0xff]
    %v135 = vld [vmem:[#allocation2 + $0x278] sm:$0xff]
    %v136 = vld [vmem:[#allocation2 + $0x280] sm:$0xff]
    %v137 = vld [vmem:[#allocation2 + $0x288] sm:$0xff]
    %v138 = vld [vmem:[#allocation2 + $0x290] sm:$0xff]
    %v139 = vld [vmem:[#allocation2 + $0x298] sm:$0xff]
    %v140 = vld [vmem:[#allocation2 + $0x2a0] sm:$0xff]
    %v141 = vld [vmem:[#allocation2 + $0x2a8] sm:$0xff]
    %v142 = vld [vmem:[#allocation2 + $0x2b0] sm:$0xff]
    %v143 = vld [vmem:[#allocation2 + $0x2b8] sm:$0xff]
    %v144 = vld [vmem:[#allocation2 + $0x2c0] sm:$0xff]
    %v145 = vld [vmem:[#allocation2 + $0x2c8] sm:$0xff]
    %v146 = vld [vmem:[#allocation2 + $0x2d0] sm:$0xff]
    %v147 = vld [vmem:[#allocation2 + $0x2d8] sm:$0xff]
    %v148 = vld [vmem:[#allocation2 + $0x2e0] sm:$0xff]
    %v149 = vld [vmem:[#allocation2 + $0x2e8] sm:$0xff]
    %v150 = vld [vmem:[#allocation2 + $0x2f0] sm:$0xff]
    %v151 = vld [vmem:[#allocation2 + $0x2f8] sm:$0xff]
    %v152 = vld [vmem:[#allocation2 + $0x300] sm:$0xff]
    %v153 = vld [vmem:[#allocation2 + $0x308] sm:$0xff]
    %v154 = vld [vmem:[#allocation2 + $0x310] sm:$0xff]
    %v155 = vld [vmem:[#allocation2 + $0x318] sm:$0xff]
    %v156 = vld [vmem:[#allocation2 + $0x320] sm:$0xff]
    %v157 = vld [vmem:[#allocation2 + $0x328] sm:$0xff]
    %v158 = vld [vmem:[#allocation2 + $0x330] sm:$0xff]
    %v159 = vld [vmem:[#allocation2 + $0x338] sm:$0xff]
    %v160 = vld [vmem:[#allocation2 + $0x340] sm:$0xff]
    %v161 = vld [vmem:[#allocation2 + $0x348] sm:$0xff]
    %v162 = vld [vmem:[#allocation2 + $0x350] sm:$0xff]
    %v163 = vld [vmem:[#allocation2 + $0x358] sm:$0xff]
    %v164 = vld [vmem:[#allocation2 + $0x360] sm:$0xff]
    %v165 = vld [vmem:[#allocation2 + $0x368] sm:$0xff]
    %v166 = vld [vmem:[#allocation2 + $0x370] sm:$0xff]
    %v167 = vld [vmem:[#allocation2 + $0x378] sm:$0xff]
    %v168 = vld [vmem:[#allocation2 + $0x380] sm:$0xff]
    %v169 = vld [vmem:[#allocation2 + $0x388] sm:$0xff]
    %v170 = vld [vmem:[#allocation2 + $0x390] sm:$0xff]
    %v171 = vld [vmem:[#allocation2 + $0x398] sm:$0xff]
    %v172 = vld [vmem:[#allocation2 + $0x3a0] sm:$0xff]
    %v173 = vld [vmem:[#allocation2 + $0x3a8] sm:$0xff]
    %v174 = vld [vmem:[#allocation2 + $0x3b0] sm:$0xff]
    %v175 = vld [vmem:[#allocation2 + $0x3b8] sm:$0xff]
    %v176 = vld [vmem:[#allocation2 + $0x3c0] sm:$0xff]
    %v177 = vld [vmem:[#allocation2 + $0x3c8] sm:$0xff]
    %v178 = vld [vmem:[#allocation2 + $0x3d0] sm:$0xff]
    %v179 = vld [vmem:[#allocation2 + $0x3d8] sm:$0xff]
    %v180 = vld [vmem:[#allocation2 + $0x3e0] sm:$0xff]
    %v181 = vld [vmem:[#allocation2 + $0x3e8] sm:$0xff]
    %v182 = vld [vmem:[#allocation2 + $0x3f0] sm:$0xff]
    %v183 = vld [vmem:[#allocation2 + $0x3f8] sm:$0xff]
    %v184 = vld [vmem:[%s2] sm:$0xf]
    %v186 = vlaneseq
    %v187 = vshrl.u32 %v186, 7
    %v188 = vsub.s32 0, %v187
    %v189 = vrot.slane %v184, %v188
    %v190 = vlaneseq
    %v191 = vshrl.u32 %v190, 7
    %v192 = vsub.s32 1, %v191
    %v193 = vrot.slane %v184, %v192
    %v194 = vlaneseq
    %v195 = vshrl.u32 %v194, 7
    %v196 = vsub.s32 2, %v195
    %v197 = vrot.slane %v184, %v196
    %v198 = vlaneseq
    %v199 = vshrl.u32 %v198, 7
    %v200 = vsub.s32 3, %v199
    %v201 = vrot.slane %v184, %v200
    %v208 = vunpack.c.l.s4 1983009808
    %v209 = vunpack.c.0.s8 %v208
    %v210 = vlaneseq
    %v211 = vshrl.u32 %v210, 7
    %v212 = vsub.s32 %v209, %v211
    %v213 = vrot.slane %v55, %v212
    %v214 = vcombine.high %v213, %v213
    %217 = vmatprep.subr.mxu0 %v57
    %218 = vmatpush1.msra.mxu0 %v56
    %219 = vmatprep.subr.mxu0 %v61
    %220 = vmatpush1.msra.mxu0 %v60
    %221 = vmatprep.subr.mxu0 %v65
    %222 = vmatpush1.msra.mxu0 %v64
    %223 = vmatprep.subr.mxu0 %v69
    %224 = vmatpush1.msra.mxu0 %v68
    %225 = vmatprep.subr.mxu0 %v73
    %226 = vmatpush1.msra.mxu0 %v72
    %227 = vmatprep.subr.mxu0 %v77
    %228 = vmatpush1.msra.mxu0 %v76
    %229 = vmatprep.subr.mxu0 %v81
    %230 = vmatpush1.msra.mxu0 %v80
    %231 = vmatprep.subr.mxu0 %v85
    %232 = vmatpush1.msra.mxu0 %v84
    %233 = vmatprep.subr.mxu0 %v89
    %234 = vmatpush1.msra.mxu0 %v88
    %235 = vmatprep.subr.mxu0 %v93
    %236 = vmatpush1.msra.mxu0 %v92
    %237 = vmatprep.subr.mxu0 %v97
    %238 = vmatpush1.msra.mxu0 %v96
    %239 = vmatprep.subr.mxu0 %v101
    %240 = vmatpush1.msra.mxu0 %v100
    %241 = vmatprep.subr.mxu0 %v105
    %242 = vmatpush1.msra.mxu0 %v104
    %243 = vmatprep.subr.mxu0 %v109
    %244 = vmatpush1.msra.mxu0 %v108
    %245 = vmatprep.subr.mxu0 %v113
    %246 = vmatpush1.msra.mxu0 %v112
    %247 = vmatprep.subr.mxu0 %v117
    %248 = vmatpush1.msra.mxu0 %v116
    %249 = vmatprep.subr.mxu0 %v121
    %250 = vmatpush1.msra.mxu0 %v120
    %251 = vmatprep.subr.mxu0 %v125
    %252 = vmatpush1.msra.mxu0 %v124
    %253 = vmatprep.subr.mxu0 %v129
    %254 = vmatpush1.msra.mxu0 %v128
    %255 = vmatprep.subr.mxu0 %v133
    %256 = vmatpush1.msra.mxu0 %v132
    %257 = vmatprep.subr.mxu0 %v137
    %258 = vmatpush1.msra.mxu0 %v136
    %259 = vmatprep.subr.mxu0 %v141
    %260 = vmatpush1.msra.mxu0 %v140
    %261 = vmatprep.subr.mxu0 %v145
    %262 = vmatpush1.msra.mxu0 %v144
    %263 = vmatprep.subr.mxu0 %v149
    %264 = vmatpush1.msra.mxu0 %v148
    %265 = vmatprep.subr.mxu0 %v153
    %266 = vmatpush1.msra.mxu0 %v152
    %267 = vmatprep.subr.mxu0 %v157
    %268 = vmatpush1.msra.mxu0 %v156
    %269 = vmatprep.subr.mxu0 %v161
    %270 = vmatpush1.msra.mxu0 %v160
    %271 = vmatprep.subr.mxu0 %v165
    %272 = vmatpush1.msra.mxu0 %v164
    %273 = vmatprep.subr.mxu0 %v169
    %274 = vmatpush1.msra.mxu0 %v168
    %275 = vmatprep.subr.mxu0 %v173
    %276 = vmatpush1.msra.mxu0 %v172
    %277 = vmatprep.subr.mxu0 %v177
    %278 = vmatpush1.msra.mxu0 %v176
    %279 = vmatprep.subr.mxu0 %v181
    %280 = vmatpush1.msra.mxu0 %v180
    %281 = vmatprep.mubr.f32.mxu0 %v214
    %282 = vmatmul.mubr.f32.gmra.mrb[0].mxu0 %v213
    %v283 = vpop.f32.mrb[0].mxu0
    %v284 = vadd.f32 %v189, %v283
    %v285 = vpop.f32.mrb[0].mxu0
    %v286 = vadd.f32 %v193, %v285
    %287 = vdwg.mxu0
    %288 = vmatprep.subr.mxu0 %v59
    %289 = vmatpush1.msra.mxu0 %v58
    %290 = vmatprep.subr.mxu0 %v63
    %291 = vmatpush1.msra.mxu0 %v62
    %292 = vmatprep.subr.mxu0 %v67
    %293 = vmatpush1.msra.mxu0 %v66
    %294 = vmatprep.subr.mxu0 %v71
    %295 = vmatpush1.msra.mxu0 %v70
    %296 = vmatprep.subr.mxu0 %v75
    %297 = vmatpush1.msra.mxu0 %v74
    %298 = vmatprep.subr.mxu0 %v79
    %299 = vmatpush1.msra.mxu0 %v78
    %300 = vmatprep.subr.mxu0 %v83
    %301 = vmatpush1.msra.mxu0 %v82
    %302 = vmatprep.subr.mxu0 %v87
    %303 = vmatpush1.msra.mxu0 %v86
    %304 = vmatprep.subr.mxu0 %v91
    %305 = vmatpush1.msra.mxu0 %v90
    %306 = vmatprep.subr.mxu0 %v95
    %307 = vmatpush1.msra.mxu0 %v94
    %308 = vmatprep.subr.mxu0 %v99
    %309 = vmatpush1.msra.mxu0 %v98
    %310 = vmatprep.subr.mxu0 %v103
    %311 = vmatpush1.msra.mxu0 %v102
    %312 = vmatprep.subr.mxu0 %v107
    %313 = vmatpush1.msra.mxu0 %v106
    %314 = vmatprep.subr.mxu0 %v111
    %315 = vmatpush1.msra.mxu0 %v110
    %316 = vmatprep.subr.mxu0 %v115
    %317 = vmatpush1.msra.mxu0 %v114
    %318 = vmatprep.subr.mxu0 %v119
    %319 = vmatpush1.msra.mxu0 %v118
    %320 = vmatprep.subr.mxu0 %v123
    %321 = vmatpush1.msra.mxu0 %v122
    %322 = vmatprep.subr.mxu0 %v127
    %323 = vmatpush1.msra.mxu0 %v126
    %324 = vmatprep.subr.mxu0 %v131
    %325 = vmatpush1.msra.mxu0 %v130
    %326 = vmatprep.subr.mxu0 %v135
    %327 = vmatpush1.msra.mxu0 %v134
    %328 = vmatprep.subr.mxu0 %v139
    %329 = vmatpush1.msra.mxu0 %v138
    %330 = vmatprep.subr.mxu0 %v143
    %331 = vmatpush1.msra.mxu0 %v142
    %332 = vmatprep.subr.mxu0 %v147
    %333 = vmatpush1.msra.mxu0 %v146
    %334 = vmatprep.subr.mxu0 %v151
    %335 = vmatpush1.msra.mxu0 %v150
    %336 = vmatprep.subr.mxu0 %v155
    %337 = vmatpush1.msra.mxu0 %v154
    %338 = vmatprep.subr.mxu0 %v159
    %339 = vmatpush1.msra.mxu0 %v158
    %340 = vmatprep.subr.mxu0 %v163
    %341 = vmatpush1.msra.mxu0 %v162
    %342 = vmatprep.subr.mxu0 %v167
    %343 = vmatpush1.msra.mxu0 %v166
    %344 = vmatprep.subr.mxu0 %v171
    %345 = vmatpush1.msra.mxu0 %v170
    %346 = vmatprep.subr.mxu0 %v175
    %347 = vmatpush1.msra.mxu0 %v174
    %348 = vmatprep.subr.mxu0 %v179
    %349 = vmatpush1.msra.mxu0 %v178
    %350 = vmatprep.subr.mxu0 %v183
    %351 = vmatpush1.msra.mxu0 %v182
    %352 = vmatprep.mubr.f32.mxu0 %v214
    %353 = vmatmul.mubr.f32.gmra.mrb[0].mxu0 %v213
    %v354 = vpop.f32.mrb[0].mxu0
    %v355 = vadd.f32 %v197, %v354
    %v356 = vpop.f32.mrb[0].mxu0
    %v357 = vadd.f32 %v201, %v356
    %358 = vdwg.mxu0
    %vm359 = vcmp.gt.f32.partialorder %v284, 0.0
    %vm360 = vcmp.gt.f32.partialorder %v286, 0.0
    %vm361 = vcmp.gt.f32.partialorder %v355, 0.0
    %vm362 = vcmp.gt.f32.partialorder %v357, 0.0
    %v363 = vmin.f32 %v284, 0.0
    %v364 = vmin.f32 %v286, 0.0
    %v365 = vmin.f32 %v355, 0.0
    %v366 = vmin.f32 %v357, 0.0
    %v367 = vmul.f32 %v363, 1.442695
    %v368 = vpow.pop %v367
    %v369 = vmul.f32 %v364, 1.442695
    %v370 = vpow.pop %v369
    %v371 = vmul.f32 %v365, 1.442695
    %v372 = vpow.pop %v371
    %v373 = vmul.f32 %v366, 1.442695
    %v374 = vpow.pop %v373
    %v375 = vsub.f32 %v368, 1.0
    %v376 = vsub.f32 %v370, 1.0
    %v377 = vsub.f32 %v372, 1.0
    %v378 = vsub.f32 %v374, 1.0
    %v379 = vsel %vm359, %v284, %v375
    %v380 = vsel %vm360, %v286, %v376
    %v381 = vsel %vm361, %v355, %v377
    %v382 = vsel %vm362, %v357, %v378
    %v383 = vld [vmem:[#allocation5] sm:$0xff]
    %v384 = vld [vmem:[#allocation5 + $0x8] sm:$0xff]
    %v385 = vld [vmem:[#allocation5 + $0x10] sm:$0xff]
    %v386 = vld [vmem:[#allocation5 + $0x18] sm:$0xff]
    %v387 = vld [vmem:[#allocation5 + $0x20] sm:$0xff]
    %v388 = vld [vmem:[#allocation5 + $0x28] sm:$0xff]
    %v389 = vld [vmem:[#allocation5 + $0x30] sm:$0xff]
    %v390 = vld [vmem:[#allocation5 + $0x38] sm:$0xff]
    %v391 = vld [vmem:[#allocation5 + $0x40] sm:$0xff]
    %v392 = vld [vmem:[#allocation5 + $0x48] sm:$0xff]
    %v393 = vld [vmem:[#allocation5 + $0x50] sm:$0xff]
    %v394 = vld [vmem:[#allocation5 + $0x58] sm:$0xff]
    %v395 = vld [vmem:[#allocation5 + $0x60] sm:$0xff]
    %v396 = vld [vmem:[#allocation5 + $0x68] sm:$0xff]
    %v397 = vld [vmem:[#allocation5 + $0x70] sm:$0xff]
    %v398 = vld [vmem:[#allocation5 + $0x78] sm:$0xff]
    %v399 = vld [vmem:[#allocation5 + $0x80] sm:$0xff]
    %v400 = vld [vmem:[#allocation5 + $0x88] sm:$0xff]
    %v401 = vld [vmem:[#allocation5 + $0x90] sm:$0xff]
    %v402 = vld [vmem:[#allocation5 + $0x98] sm:$0xff]
    %v403 = vld [vmem:[#allocation5 + $0xa0] sm:$0xff]
    %v404 = vld [vmem:[#allocation5 + $0xa8] sm:$0xff]
    %v405 = vld [vmem:[#allocation5 + $0xb0] sm:$0xff]
    %v406 = vld [vmem:[#allocation5 + $0xb8] sm:$0xff]
    %v407 = vld [vmem:[#allocation5 + $0xc0] sm:$0xff]
    %v408 = vld [vmem:[#allocation5 + $0xc8] sm:$0xff]
    %v409 = vld [vmem:[#allocation5 + $0xd0] sm:$0xff]
    %v410 = vld [vmem:[#allocation5 + $0xd8] sm:$0xff]
    %v411 = vld [vmem:[#allocation5 + $0xe0] sm:$0xff]
    %v412 = vld [vmem:[#allocation5 + $0xe8] sm:$0xff]
    %v413 = vld [vmem:[#allocation5 + $0xf0] sm:$0xff]
    %v414 = vld [vmem:[#allocation5 + $0xf8] sm:$0xff]
    %v415 = vld [vmem:[#allocation5 + $0x100] sm:$0xff]
    %v416 = vld [vmem:[#allocation5 + $0x108] sm:$0xff]
    %v417 = vld [vmem:[#allocation5 + $0x110] sm:$0xff]
    %v418 = vld [vmem:[#allocation5 + $0x118] sm:$0xff]
    %v419 = vld [vmem:[#allocation5 + $0x120] sm:$0xff]
    %v420 = vld [vmem:[#allocation5 + $0x128] sm:$0xff]
    %v421 = vld [vmem:[#allocation5 + $0x130] sm:$0xff]
    %v422 = vld [vmem:[#allocation5 + $0x138] sm:$0xff]
    %v423 = vld [vmem:[#allocation5 + $0x140] sm:$0xff]
    %v424 = vld [vmem:[#allocation5 + $0x148] sm:$0xff]
    %v425 = vld [vmem:[#allocation5 + $0x150] sm:$0xff]
    %v426 = vld [vmem:[#allocation5 + $0x158] sm:$0xff]
    %v427 = vld [vmem:[#allocation5 + $0x160] sm:$0xff]
    %v428 = vld [vmem:[#allocation5 + $0x168] sm:$0xff]
    %v429 = vld [vmem:[#allocation5 + $0x170] sm:$0xff]
    %v430 = vld [vmem:[#allocation5 + $0x178] sm:$0xff]
    %v431 = vld [vmem:[#allocation5 + $0x180] sm:$0xff]
    %v432 = vld [vmem:[#allocation5 + $0x188] sm:$0xff]
    %v433 = vld [vmem:[#allocation5 + $0x190] sm:$0xff]
    %v434 = vld [vmem:[#allocation5 + $0x198] sm:$0xff]
    %v435 = vld [vmem:[#allocation5 + $0x1a0] sm:$0xff]
    %v436 = vld [vmem:[#allocation5 + $0x1a8] sm:$0xff]
    %v437 = vld [vmem:[#allocation5 + $0x1b0] sm:$0xff]
    %v438 = vld [vmem:[#allocation5 + $0x1b8] sm:$0xff]
    %v439 = vld [vmem:[#allocation5 + $0x1c0] sm:$0xff]
    %v440 = vld [vmem:[#allocation5 + $0x1c8] sm:$0xff]
    %v441 = vld [vmem:[#allocation5 + $0x1d0] sm:$0xff]
    %v442 = vld [vmem:[#allocation5 + $0x1d8] sm:$0xff]
    %v443 = vld [vmem:[#allocation5 + $0x1e0] sm:$0xff]
    %v444 = vld [vmem:[#allocation5 + $0x1e8] sm:$0xff]
    %v445 = vld [vmem:[#allocation5 + $0x1f0] sm:$0xff]
    %v446 = vld [vmem:[#allocation5 + $0x1f8] sm:$0xff]
    %v447 = vld [vmem:[#allocation5 + $0x200] sm:$0xff]
    %v448 = vld [vmem:[#allocation5 + $0x208] sm:$0xff]
    %v449 = vld [vmem:[#allocation5 + $0x210] sm:$0xff]
    %v450 = vld [vmem:[#allocation5 + $0x218] sm:$0xff]
    %v451 = vld [vmem:[#allocation5 + $0x220] sm:$0xff]
    %v452 = vld [vmem:[#allocation5 + $0x228] sm:$0xff]
    %v453 = vld [vmem:[#allocation5 + $0x230] sm:$0xff]
    %v454 = vld [vmem:[#allocation5 + $0x238] sm:$0xff]
    %v455 = vld [vmem:[#allocation5 + $0x240] sm:$0xff]
    %v456 = vld [vmem:[#allocation5 + $0x248] sm:$0xff]
    %v457 = vld [vmem:[#allocation5 + $0x250] sm:$0xff]
    %v458 = vld [vmem:[#allocation5 + $0x258] sm:$0xff]
    %v459 = vld [vmem:[#allocation5 + $0x260] sm:$0xff]
    %v460 = vld [vmem:[#allocation5 + $0x268] sm:$0xff]
    %v461 = vld [vmem:[#allocation5 + $0x270] sm:$0xff]
    %v462 = vld [vmem:[#allocation5 + $0x278] sm:$0xff]
    %v463 = vld [vmem:[#allocation5 + $0x280] sm:$0xff]
    %v464 = vld [vmem:[#allocation5 + $0x288] sm:$0xff]
    %v465 = vld [vmem:[#allocation5 + $0x290] sm:$0xff]
    %v466 = vld [vmem:[#allocation5 + $0x298] sm:$0xff]
    %v467 = vld [vmem:[#allocation5 + $0x2a0] sm:$0xff]
    %v468 = vld [vmem:[#allocation5 + $0x2a8] sm:$0xff]
    %v469 = vld [vmem:[#allocation5 + $0x2b0] sm:$0xff]
    %v470 = vld [vmem:[#allocation5 + $0x2b8] sm:$0xff]
    %v471 = vld [vmem:[#allocation5 + $0x2c0] sm:$0xff]
    %v472 = vld [vmem:[#allocation5 + $0x2c8] sm:$0xff]
    %v473 = vld [vmem:[#allocation5 + $0x2d0] sm:$0xff]
    %v474 = vld [vmem:[#allocation5 + $0x2d8] sm:$0xff]
    %v475 = vld [vmem:[#allocation5 + $0x2e0] sm:$0xff]
    %v476 = vld [vmem:[#allocation5 + $0x2e8] sm:$0xff]
    %v477 = vld [vmem:[#allocation5 + $0x2f0] sm:$0xff]
    %v478 = vld [vmem:[#allocation5 + $0x2f8] sm:$0xff]
    %v479 = vld [vmem:[#allocation5 + $0x300] sm:$0xff]
    %v480 = vld [vmem:[#allocation5 + $0x308] sm:$0xff]
    %v481 = vld [vmem:[#allocation5 + $0x310] sm:$0xff]
    %v482 = vld [vmem:[#allocation5 + $0x318] sm:$0xff]
    %v483 = vld [vmem:[#allocation5 + $0x320] sm:$0xff]
    %v484 = vld [vmem:[#allocation5 + $0x328] sm:$0xff]
    %v485 = vld [vmem:[#allocation5 + $0x330] sm:$0xff]
    %v486 = vld [vmem:[#allocation5 + $0x338] sm:$0xff]
    %v487 = vld [vmem:[#allocation5 + $0x340] sm:$0xff]
    %v488 = vld [vmem:[#allocation5 + $0x348] sm:$0xff]
    %v489 = vld [vmem:[#allocation5 + $0x350] sm:$0xff]
    %v490 = vld [vmem:[#allocation5 + $0x358] sm:$0xff]
    %v491 = vld [vmem:[#allocation5 + $0x360] sm:$0xff]
    %v492 = vld [vmem:[#allocation5 + $0x368] sm:$0xff]
    %v493 = vld [vmem:[#allocation5 + $0x370] sm:$0xff]
    %v494 = vld [vmem:[#allocation5 + $0x378] sm:$0xff]
    %v495 = vld [vmem:[#allocation5 + $0x380] sm:$0xff]
    %v496 = vld [vmem:[#allocation5 + $0x388] sm:$0xff]
    %v497 = vld [vmem:[#allocation5 + $0x390] sm:$0xff]
    %v498 = vld [vmem:[#allocation5 + $0x398] sm:$0xff]
    %v499 = vld [vmem:[#allocation5 + $0x3a0] sm:$0xff]
    %v500 = vld [vmem:[#allocation5 + $0x3a8] sm:$0xff]
    %v501 = vld [vmem:[#allocation5 + $0x3b0] sm:$0xff]
    %v502 = vld [vmem:[#allocation5 + $0x3b8] sm:$0xff]
    %v503 = vld [vmem:[#allocation5 + $0x3c0] sm:$0xff]
    %v504 = vld [vmem:[#allocation5 + $0x3c8] sm:$0xff]
    %v505 = vld [vmem:[#allocation5 + $0x3d0] sm:$0xff]
    %v506 = vld [vmem:[#allocation5 + $0x3d8] sm:$0xff]
    %v507 = vld [vmem:[#allocation5 + $0x3e0] sm:$0xff]
    %v508 = vld [vmem:[#allocation5 + $0x3e8] sm:$0xff]
    %v509 = vld [vmem:[#allocation5 + $0x3f0] sm:$0xff]
    %v510 = vld [vmem:[#allocation5 + $0x3f8] sm:$0xff]
    %v511 = vld [vmem:[%s4] sm:$0x3]
    %v513 = vlaneseq
    %v514 = vshrl.u32 %v513, 7
    %v515 = vsub.s32 0, %v514
    %v516 = vrot.slane %v511, %v515
    %v517 = vlaneseq
    %v518 = vshrl.u32 %v517, 7
    %v519 = vsub.s32 1, %v518
    %v520 = vrot.slane %v511, %v519
    %523 = vmatprep.subr.mxu0 %v384
    %524 = vmatpush1.msra.mxu0 %v383
    %525 = vmatprep.subr.mxu0 %v386
    %526 = vmatpush1.msra.mxu0 %v385
    %527 = vmatprep.subr.mxu0 %v388
    %528 = vmatpush1.msra.mxu0 %v387
    %529 = vmatprep.subr.mxu0 %v390
    %530 = vmatpush1.msra.mxu0 %v389
    %531 = vmatprep.subr.mxu0 %v392
    %532 = vmatpush1.msra.mxu0 %v391
    %533 = vmatprep.subr.mxu0 %v394
    %534 = vmatpush1.msra.mxu0 %v393
    %535 = vmatprep.subr.mxu0 %v396
    %536 = vmatpush1.msra.mxu0 %v395
    %537 = vmatprep.subr.mxu0 %v398
    %538 = vmatpush1.msra.mxu0 %v397
    %539 = vmatprep.subr.mxu0 %v400
    %540 = vmatpush1.msra.mxu0 %v399
    %541 = vmatprep.subr.mxu0 %v402
    %542 = vmatpush1.msra.mxu0 %v401
    %543 = vmatprep.subr.mxu0 %v404
    %544 = vmatpush1.msra.mxu0 %v403
    %545 = vmatprep.subr.mxu0 %v406
    %546 = vmatpush1.msra.mxu0 %v405
    %547 = vmatprep.subr.mxu0 %v408
    %548 = vmatpush1.msra.mxu0 %v407
    %549 = vmatprep.subr.mxu0 %v410
    %550 = vmatpush1.msra.mxu0 %v409
    %551 = vmatprep.subr.mxu0 %v412
    %552 = vmatpush1.msra.mxu0 %v411
    %553 = vmatprep.subr.mxu0 %v414
    %554 = vmatpush1.msra.mxu0 %v413
    %555 = vmatprep.subr.mxu0 %v416
    %556 = vmatpush1.msra.mxu0 %v415
    %557 = vmatprep.subr.mxu0 %v418
    %558 = vmatpush1.msra.mxu0 %v417
    %559 = vmatprep.subr.mxu0 %v420
    %560 = vmatpush1.msra.mxu0 %v419
    %561 = vmatprep.subr.mxu0 %v422
    %562 = vmatpush1.msra.mxu0 %v421
    %563 = vmatprep.subr.mxu0 %v424
    %564 = vmatpush1.msra.mxu0 %v423
    %565 = vmatprep.subr.mxu0 %v426
    %566 = vmatpush1.msra.mxu0 %v425
    %567 = vmatprep.subr.mxu0 %v428
    %568 = vmatpush1.msra.mxu0 %v427
    %569 = vmatprep.subr.mxu0 %v430
    %570 = vmatpush1.msra.mxu0 %v429
    %571 = vmatprep.subr.mxu0 %v432
    %572 = vmatpush1.msra.mxu0 %v431
    %573 = vmatprep.subr.mxu0 %v434
    %574 = vmatpush1.msra.mxu0 %v433
    %575 = vmatprep.subr.mxu0 %v436
    %576 = vmatpush1.msra.mxu0 %v435
    %577 = vmatprep.subr.mxu0 %v438
    %578 = vmatpush1.msra.mxu0 %v437
    %579 = vmatprep.subr.mxu0 %v440
    %580 = vmatpush1.msra.mxu0 %v439
    %581 = vmatprep.subr.mxu0 %v442
    %582 = vmatpush1.msra.mxu0 %v441
    %583 = vmatprep.subr.mxu0 %v444
    %584 = vmatpush1.msra.mxu0 %v443
    %585 = vmatprep.subr.mxu0 %v446
    %586 = vmatpush1.msra.mxu0 %v445
    %587 = vmatprep.mubr.f32.mxu0 %v380
    %588 = vmatmul.mubr.f32.gmra.mrb[0].mxu0 %v379
    %v589 = vpop.f32.mrb[0].mxu0
    %v590 = vadd.f32 %v516, %v589
    %v591 = vpop.f32.mrb[0].mxu0
    %v592 = vadd.f32 %v520, %v591
    %593 = vdwg.mxu0
    %594 = vmatprep.subr.mxu0 %v448
    %595 = vmatpush1.msra.mxu0 %v447
    %596 = vmatprep.subr.mxu0 %v450
    %597 = vmatpush1.msra.mxu0 %v449
    %598 = vmatprep.subr.mxu0 %v452
    %599 = vmatpush1.msra.mxu0 %v451
    %600 = vmatprep.subr.mxu0 %v454
    %601 = vmatpush1.msra.mxu0 %v453
    %602 = vmatprep.subr.mxu0 %v456
    %603 = vmatpush1.msra.mxu0 %v455
    %604 = vmatprep.subr.mxu0 %v458
    %605 = vmatpush1.msra.mxu0 %v457
    %606 = vmatprep.subr.mxu0 %v460
    %607 = vmatpush1.msra.mxu0 %v459
    %608 = vmatprep.subr.mxu0 %v462
    %609 = vmatpush1.msra.mxu0 %v461
    %610 = vmatprep.subr.mxu0 %v464
    %611 = vmatpush1.msra.mxu0 %v463
    %612 = vmatprep.subr.mxu0 %v466
    %613 = vmatpush1.msra.mxu0 %v465
    %614 = vmatprep.subr.mxu0 %v468
    %615 = vmatpush1.msra.mxu0 %v467
    %616 = vmatprep.subr.mxu0 %v470
    %617 = vmatpush1.msra.mxu0 %v469
    %618 = vmatprep.subr.mxu0 %v472
    %619 = vmatpush1.msra.mxu0 %v471
    %620 = vmatprep.subr.mxu0 %v474
    %621 = vmatpush1.msra.mxu0 %v473
    %622 = vmatprep.subr.mxu0 %v476
    %623 = vmatpush1.msra.mxu0 %v475
    %624 = vmatprep.subr.mxu0 %v478
    %625 = vmatpush1.msra.mxu0 %v477
    %626 = vmatprep.subr.mxu0 %v480
    %627 = vmatpush1.msra.mxu0 %v479
    %628 = vmatprep.subr.mxu0 %v482
    %629 = vmatpush1.msra.mxu0 %v481
    %630 = vmatprep.subr.mxu0 %v484
    %631 = vmatpush1.msra.mxu0 %v483
    %632 = vmatprep.subr.mxu0 %v486
    %633 = vmatpush1.msra.mxu0 %v485
    %634 = vmatprep.subr.mxu0 %v488
    %635 = vmatpush1.msra.mxu0 %v487
    %636 = vmatprep.subr.mxu0 %v490
    %637 = vmatpush1.msra.mxu0 %v489
    %638 = vmatprep.subr.mxu0 %v492
    %639 = vmatpush1.msra.mxu0 %v491
    %640 = vmatprep.subr.mxu0 %v494
    %641 = vmatpush1.msra.mxu0 %v493
    %642 = vmatprep.subr.mxu0 %v496
    %643 = vmatpush1.msra.mxu0 %v495
    %644 = vmatprep.subr.mxu0 %v498
    %645 = vmatpush1.msra.mxu0 %v497
    %646 = vmatprep.subr.mxu0 %v500
    %647 = vmatpush1.msra.mxu0 %v499
    %648 = vmatprep.subr.mxu0 %v502
    %649 = vmatpush1.msra.mxu0 %v501
    %650 = vmatprep.subr.mxu0 %v504
    %651 = vmatpush1.msra.mxu0 %v503
    %652 = vmatprep.subr.mxu0 %v506
    %653 = vmatpush1.msra.mxu0 %v505
    %654 = vmatprep.subr.mxu0 %v508
    %655 = vmatpush1.msra.mxu0 %v507
    %656 = vmatprep.subr.mxu0 %v510
    %657 = vmatpush1.msra.mxu0 %v509
    %658 = vmatprep.mubr.f32.mxu0 %v382
    %659 = vmatmul.mubr.f32.gmra.mrb[0].mxu0 %v381
    %v660 = vpop.f32.mrb[0].mxu0
    %v661 = vadd.f32 %v590, %v660
    %v662 = vpop.f32.mrb[0].mxu0
    %v663 = vadd.f32 %v592, %v662
    %664 = vdwg.mxu0
    %vm665 = vcmp.gt.f32.partialorder %v661, 0.0
    %vm666 = vcmp.gt.f32.partialorder %v663, 0.0
    %v667 = vmin.f32 %v661, 0.0
    %v668 = vmin.f32 %v663, 0.0
    %v669 = vmul.f32 %v667, 1.442695
    %v670 = vpow.pop %v669
    %v671 = vmul.f32 %v668, 1.442695
    %v672 = vpow.pop %v671
    %v673 = vsub.f32 %v670, 1.0
    %v674 = vsub.f32 %v672, 1.0
    %v675 = vsel %vm665, %v661, %v673
    %v676 = vsel %vm666, %v663, %v674
    %v677 = vld [vmem:[%s5] sm:$0xff]
    %v678 = vld [vmem:[%s5 + $0x8] sm:$0xff]
    %v679 = vld [vmem:[%s5 + $0x10] sm:$0xff]
    %v680 = vld [vmem:[%s5 + $0x18] sm:$0xff]
    %v681 = vld [vmem:[%s5 + $0x20] sm:$0xff]
    %v682 = vld [vmem:[%s5 + $0x28] sm:$0xff]
    %v683 = vld [vmem:[%s5 + $0x30] sm:$0xff]
    %v684 = vld [vmem:[%s5 + $0x38] sm:$0xff]
    %v685 = vld [vmem:[%s5 + $0x40] sm:$0xff]
    %v686 = vld [vmem:[%s5 + $0x48] sm:$0xff]
    %v687 = vld [vmem:[%s5 + $0x50] sm:$0xff]
    %v688 = vld [vmem:[%s5 + $0x58] sm:$0xff]
    %v689 = vld [vmem:[%s5 + $0x60] sm:$0xff]
    %v690 = vld [vmem:[%s5 + $0x68] sm:$0xff]
    %v691 = vld [vmem:[%s5 + $0x70] sm:$0xff]
    %v692 = vld [vmem:[%s5 + $0x78] sm:$0xff]
    %v693 = vld [vmem:[%s5 + $0x80] sm:$0xff]
    %v694 = vld [vmem:[%s5 + $0x88] sm:$0xff]
    %v695 = vld [vmem:[%s5 + $0x90] sm:$0xff]
    %v696 = vld [vmem:[%s5 + $0x98] sm:$0xff]
    %v697 = vld [vmem:[%s5 + $0xa0] sm:$0xff]
    %v698 = vld [vmem:[%s5 + $0xa8] sm:$0xff]
    %v699 = vld [vmem:[%s5 + $0xb0] sm:$0xff]
    %v700 = vld [vmem:[%s5 + $0xb8] sm:$0xff]
    %v701 = vld [vmem:[%s5 + $0xc0] sm:$0xff]
    %v702 = vld [vmem:[%s5 + $0xc8] sm:$0xff]
    %v703 = vld [vmem:[%s5 + $0xd0] sm:$0xff]
    %v704 = vld [vmem:[%s5 + $0xd8] sm:$0xff]
    %v705 = vld [vmem:[%s5 + $0xe0] sm:$0xff]
    %v706 = vld [vmem:[%s5 + $0xe8] sm:$0xff]
    %v707 = vld [vmem:[%s5 + $0xf0] sm:$0xff]
    %v708 = vld [vmem:[%s5 + $0xf8] sm:$0xff]
    %v709 = vld [vmem:[%s6] sm:$0x1]
    %v711 = vlaneseq
    %v712 = vshrl.u32 %v711, 7
    %v713 = vsub.s32 0, %v712
    %v714 = vrot.slane %v709, %v713
    %716 = vmatprep.subr.mxu0 0.0
    %717 = vmatpush1.msra.mxu0 %v677
    %718 = vmatprep.subr.mxu0 0.0
    %719 = vmatpush1.msra.mxu0 %v678
    %720 = vmatprep.subr.mxu0 0.0
    %721 = vmatpush1.msra.mxu0 %v679
    %722 = vmatprep.subr.mxu0 0.0
    %723 = vmatpush1.msra.mxu0 %v680
    %724 = vmatprep.subr.mxu0 0.0
    %725 = vmatpush1.msra.mxu0 %v681
    %726 = vmatprep.subr.mxu0 0.0
    %727 = vmatpush1.msra.mxu0 %v682
    %728 = vmatprep.subr.mxu0 0.0
    %729 = vmatpush1.msra.mxu0 %v683
    %730 = vmatprep.subr.mxu0 0.0
    %731 = vmatpush1.msra.mxu0 %v684
    %732 = vmatprep.subr.mxu0 0.0
    %733 = vmatpush1.msra.mxu0 %v685
    %734 = vmatprep.subr.mxu0 0.0
    %735 = vmatpush1.msra.mxu0 %v686
    %736 = vmatprep.subr.mxu0 0.0
    %737 = vmatpush1.msra.mxu0 %v687
    %738 = vmatprep.subr.mxu0 0.0
    %739 = vmatpush1.msra.mxu0 %v688
    %740 = vmatprep.subr.mxu0 0.0
    %741 = vmatpush1.msra.mxu0 %v689
    %742 = vmatprep.subr.mxu0 0.0
    %743 = vmatpush1.msra.mxu0 %v690
    %744 = vmatprep.subr.mxu0 0.0
    %745 = vmatpush1.msra.mxu0 %v691
    %746 = vmatprep.subr.mxu0 0.0
    %747 = vmatpush1.msra.mxu0 %v692
    %748 = vmatprep.subr.mxu0 0.0
    %749 = vmatpush1.msra.mxu0 %v693
    %750 = vmatprep.subr.mxu0 0.0
    %751 = vmatpush1.msra.mxu0 %v694
    %752 = vmatprep.subr.mxu0 0.0
    %753 = vmatpush1.msra.mxu0 %v695
    %754 = vmatprep.subr.mxu0 0.0
    %755 = vmatpush1.msra.mxu0 %v696
    %756 = vmatprep.subr.mxu0 0.0
    %757 = vmatpush1.msra.mxu0 %v697
    %758 = vmatprep.subr.mxu0 0.0
    %759 = vmatpush1.msra.mxu0 %v698
    %760 = vmatprep.subr.mxu0 0.0
    %761 = vmatpush1.msra.mxu0 %v699
    %762 = vmatprep.subr.mxu0 0.0
    %763 = vmatpush1.msra.mxu0 %v700
    %764 = vmatprep.subr.mxu0 0.0
    %765 = vmatpush1.msra.mxu0 %v701
    %766 = vmatprep.subr.mxu0 0.0
    %767 = vmatpush1.msra.mxu0 %v702
    %768 = vmatprep.subr.mxu0 0.0
    %769 = vmatpush1.msra.mxu0 %v703
    %770 = vmatprep.subr.mxu0 0.0
    %771 = vmatpush1.msra.mxu0 %v704
    %772 = vmatprep.subr.mxu0 0.0
    %773 = vmatpush1.msra.mxu0 %v705
    %774 = vmatprep.subr.mxu0 0.0
    %775 = vmatpush1.msra.mxu0 %v706
    %776 = vmatprep.subr.mxu0 0.0
    %777 = vmatpush1.msra.mxu0 %v707
    %778 = vmatprep.subr.mxu0 0.0
    %779 = vmatpush1.msra.mxu0 %v708
    %780 = vmatprep.mubr.f32.mxu0 %v676
    %781 = vmatmul.mubr.f32.gmra.mrb[0].mxu0 %v675
    %v782 = vpop.f32.mrb[0].mxu0
    %v783 = vadd.f32 %v714, %v782
    %v784 = vpop.f32.mrb[0].mxu0
    %785 = vdwg.mxu0
    %vm786 = vcmask 25600
    %787 = vst.msk [vmem:[#allocation7] sm:$0x3] %vm786, %v783
    // Predicated region
    $region38: #{eegnet_forward.1} parent=1 // pred_check
      _
    $region39: #{eegnet_forward.1} parent=1 // pred_check_branch
      %789 = sbr.rel (0) target = $region41
    $region40: #{eegnet_forward.1} parent=1 // pred_region
      %s791 = ssub.s32 32, 32
      %792 = vsyncadd [#allocation4], %s791
      %s794 = sshll.u32 [#allocation7], 4
      %s795 = int_to_ptr.vmem [resolvable:$true] %s794
      %797 = dma.vmem_to_hbm [thread:$0]  %s795, 32, %s7, [#allocation4]
    $region41: #{eegnet_forward.1} parent=1 // pred_fallthru
      _
    // Predicated region
    $region42: #{eegnet_forward.1} parent=1 // pred_check
      _
    $region43: #{eegnet_forward.1} parent=1 // pred_check_branch
      %799 = sbr.rel (0) target = $region45
    $region44: #{eegnet_forward.1} parent=1 // pred_region
      %800 = dma.done [#allocation4], 32
    $region45: #{eegnet_forward.1} parent=1 // pred_fallthru
      _
    %801 = vsyncpa [#allocation3], 1
    %802 = vsyncpa [#allocation6], 1
    %803 = vsyncpa [#allocation4], 1

</llo_original>
